<compile_context>
chip_gen: v7x
topology: tpu7x:2x2x1
jax: 0.10.0
libtpu: 0.0.40
codegen_flags: <defaults>
</compile_context>

<pallas_src>
import jax
import jax.numpy as jnp
from jax.experimental import pallas as pl
from jax.experimental.pallas import tpu as pltpu


# ------------------------------------------------------------------ kernel --
def _ffn_kernel(x_ref, w13_ref, w2_ref, o_ref, acc_ref):
    # x_ref  : (tm, H)      activation tile
    # w13_ref: (H, 2*ti)    fused [gate | up] weight tile (pre-transposed)
    # w2_ref : (ti, H)      down-projection weight tile (pre-transposed)
    # o_ref  : (tm, H)      output tile (written on the last ti step)
    # acc_ref: (tm, H) f32  running partial sum over the intermediate dim
    j = pl.program_id(1)

    @pl.when(j == 0)
    def _():
        acc_ref[...] = jnp.zeros_like(acc_ref)

    ti = w2_ref.shape[0]
    # One wide matmul covers both the w1 (gate) and w3 (up) projections.
    h = jnp.dot(x_ref[...], w13_ref[...], preferred_element_type=jnp.float32)
    h1 = h[:, :ti]
    h3 = h[:, ti:]
    gated = (h1 * jax.nn.sigmoid(h1)) * h3                  # SiLU gate in f32
    acc_ref[...] += jnp.dot(gated.astype(w2_ref.dtype), w2_ref[...],
                            preferred_element_type=jnp.float32)

    @pl.when(j == pl.num_programs(1) - 1)
    def _():
        o_ref[...] = acc_ref[...].astype(o_ref.dtype)


# --------------------------------------------------------------- tile plan --
_TM_CANDS = (1024, 768, 512, 384, 256, 192, 128, 96, 64, 48, 32, 16, 8)
_TI_CANDS = (512, 384, 256, 128)          # ti >= 128: lane-aligned gate slice


def _round_up(x, m):
    return ((x + m - 1) // m) * m


def _vmem_cap_bytes():
    cap = 64 * 1024 * 1024                 # conservative fallback (v7x per-TC)
    try:
        info = pltpu.get_tpu_info()
        cap = int(getattr(info, "vmem_capacity_bytes", cap)) or cap
    except Exception:
        pass
    return cap


def _plan_bytes(tm, ti, hidden, w_item, x_item, o_item):
    """Rough VMEM footprint of one pipelined step of the tile plan."""
    weights = 2 * (hidden * 2 * ti + ti * hidden) * w_item   # double-buffered
    act = 2 * tm * hidden * (x_item + o_item)                # x/out tiles (2x)
    acc = tm * hidden * 4                                    # f32 accumulator
    tmp = tm * 3 * ti * 4                                    # h + gated temps
    return weights + act + acc + tmp


def _plan_tiles(tokens, hidden, inter, w_item, x_item, o_item,
                *, max_tm, max_ti, sublane, budget):
    """Pick (tm, ti). tm is maximized first (it drives arithmetic intensity);
    ti is shrunk before tm when the plan does not fit the VMEM budget."""
    inter128 = _round_up(max(inter, 1), 128)
    tm_limit = max(sublane, min(_round_up(max_tm, sublane),
                                _round_up(max(tokens, 1), sublane)))
    tm_cands = sorted({c for c in _TM_CANDS
                       if c % sublane == 0 and c <= tm_limit} | {tm_limit},
                      reverse=True)
    ti_cands = [c for c in _TI_CANDS if c <= max_ti and c <= inter128] or [128]

    for tm in tm_cands:
        fitting = [ti for ti in ti_cands
                   if _plan_bytes(tm, ti, hidden, w_item, x_item, o_item) <= budget]
        if fitting:
            divs = [ti for ti in fitting if inter128 % ti == 0]
            return tm, (divs[0] if divs else fitting[0])
    # Nothing fits the budget: take the smallest plan and let the compiler try.
    return tm_cands[-1], ti_cands[-1]


# ------------------------------------------------------------- weight prep --
def prepare_ffn_weights(w1, w2, w3, *, ti, compute_dtype=None):
    """Pack/transpose the weights ONCE (cache this at parameter-init time).

    w1, w3 : [intermediate, hidden]   (PyTorch nn.Linear layout)
    w2     : [hidden, intermediate]
    Returns (w13, w2_t, inter_p) where
      w13  : [hidden, 2*inter_p]  blocks of [w1_j | w3_j] per ti-chunk
      w2_t : [inter_p, hidden]
    The intermediate dim is zero-padded to a multiple of ti (zeros contribute
    nothing to the SwiGLU sum, so the result is unchanged).
    """
    inter, hidden = w1.shape
    inter_p = _round_up(inter, ti)
    w1_t = jnp.swapaxes(w1, 0, 1)          # (hidden, inter)
    w3_t = jnp.swapaxes(w3, 0, 1)          # (hidden, inter)
    w2_t = jnp.swapaxes(w2, 0, 1)          # (inter, hidden)
    if inter_p != inter:
        pad = inter_p - inter
        w1_t = jnp.pad(w1_t, ((0, 0), (0, pad)))
        w3_t = jnp.pad(w3_t, ((0, 0), (0, pad)))
        w2_t = jnp.pad(w2_t, ((0, pad), (0, 0)))
    n_i = inter_p // ti
    w13 = jnp.concatenate(
        [w1_t.reshape(hidden, n_i, ti), w3_t.reshape(hidden, n_i, ti)],
        axis=2).reshape(hidden, 2 * inter_p)
    if compute_dtype is not None:
        w13 = w13.astype(compute_dtype)
        w2_t = w2_t.astype(compute_dtype)
    return w13, w2_t, inter_p


# ----------------------------------------------------------------- wrapper --
def make_feed_forward(w1, w2, w3, *, compute_dtype=None, max_tm=1024, max_ti=512):
    """Build a SwiGLU FFN closure with all weight prep hoisted out of the call.

    compute_dtype : pass jnp.bfloat16 for real workloads (MXU-native matmuls,
                    half the weight HBM traffic).  SiLU gating and the
                    accumulator stay in f32; the output keeps x.dtype.
                    Default None keeps the input dtype (exact module math).
    """
    inter, hidden = w1.shape
    assert w3.shape == (inter, hidden) and w2.shape == (hidden, inter)

    w_dtype = jnp.dtype(compute_dtype) if compute_dtype is not None else jnp.dtype(w1.dtype)
    w_item = w_dtype.itemsize
    act_item_guess = w_item if compute_dtype is not None else 4
    sublane = {1: 32, 2: 16}.get(w_item, 8)      # bf16 packs 16 rows, int8 32

    vmem_cap = _vmem_cap_bytes()
    budget = int(vmem_cap * 0.8)

    # ti is fixed here (it determines the packed weight layout); tm is chosen
    # per call from the actual token count.
    _, ti = _plan_tiles(max_tm, hidden, inter, w_item, act_item_guess,
                        act_item_guess, max_tm=max_tm, max_ti=max_ti,
                        sublane=sublane, budget=budget)

    # One-time weight packing (no per-call transpose/concat HBM traffic).
    w13, w2_t, inter_p = prepare_ffn_weights(w1, w2, w3, ti=ti,
                                             compute_dtype=compute_dtype)
    n_i = inter_p // ti

    def forward(x, *, tm=None):
        orig_shape = x.shape
        out_dtype = x.dtype
        assert orig_shape[-1] == hidden, "last dim of x must be hidden_size"
        x2d = x.reshape(-1, hidden)
        tokens = x2d.shape[0]

        if compute_dtype is not None:
            x2d = x2d.astype(compute_dtype)
        x_item = jnp.dtype(x2d.dtype).itemsize
        o_item = jnp.dtype(out_dtype).itemsize

        # Roofline-friendly token tile: as big as tokens / VMEM allow.
        tm_limit = min(_round_up(max(tokens, 1), sublane),
                       _round_up(max_tm, sublane))
        if tm is None:
            tm_sel = tm_limit
            while (tm_sel > sublane and
                   _plan_bytes(tm_sel, ti, hidden, w_item, x_item, o_item) > budget):
                tm_sel = _round_up(tm_sel // 2, sublane)
        else:
            tm_sel = tm
        tm_sel = max(sublane, min(_round_up(tm_sel, sublane), tm_limit))

        tokens_p = _round_up(tokens, tm_sel)
        if tokens_p != tokens:
            x2d = jnp.pad(x2d, ((0, tokens_p - tokens), (0, 0)))
        n_m = tokens_p // tm_sel

        needed = _plan_bytes(tm_sel, ti, hidden, w_item, x_item, o_item)
        vmem_limit = int(min(vmem_cap, max(int(needed * 1.2), 32 * 1024 * 1024)))

        # TODO(synk): for v7x decode (n_m == 1) the "parallel" token axis gives
        # one of the two TensorCores nothing to do; a core-split of the
        # intermediate reduction (two partial f32 accumulators + add) would
        # recover ~2x there.
        out2d = pl.pallas_call(
            _ffn_kernel,
            out_shape=jax.ShapeDtypeStruct((tokens_p, hidden), out_dtype),
            grid_spec=pltpu.PrefetchScalarGridSpec(
                num_scalar_prefetch=0,
                grid=(n_m, n_i),
                in_specs=[
                    pl.BlockSpec((tm_sel, hidden), lambda i, j: (i, 0)),
                    pl.BlockSpec((hidden, 2 * ti), lambda i, j: (0, j)),
                    pl.BlockSpec((ti, hidden), lambda i, j: (j, 0)),
                ],
                out_specs=pl.BlockSpec((tm_sel, hidden), lambda i, j: (i, 0)),
                scratch_shapes=[pltpu.VMEM((tm_sel, hidden), jnp.float32)],
            ),
            compiler_params=pltpu.CompilerParams(
                dimension_semantics=("parallel", "arbitrary"),
                vmem_limit_bytes=vmem_limit,
            ),
        )(x2d, w13, w2_t)

        if tokens_p != tokens:
            out2d = out2d[:tokens]
        return out2d.reshape(orig_shape)

    return forward


def feed_forward(x, w1, w2, w3, *, compute_dtype=None, max_tm=1024, max_ti=512, tm=None):
    """One-shot convenience wrapper.  For repeated calls, build the closure
    once via make_feed_forward() so the weight packing is hoisted."""
    return make_feed_forward(w1, w2, w3, compute_dtype=compute_dtype,
                             max_tm=max_tm, max_ti=max_ti)(x, tm=tm)


# -------------------------------------------------------------------- main --
if __name__ == "__main__":
    def ref_ffn(x, w1, w2, w3):
        h1 = x @ w1.T
        h3 = x @ w3.T
        return (h1 * jax.nn.sigmoid(h1) * h3) @ w2.T

    key = jax.random.PRNGKey(0)
    keys = jax.random.split(key, 8)

    # ---- config 1: module-sized smoke test (hidden=32, intermediate=64) ----
    batch, seq, hidden, inter = 2, 8, 32, 64
    x = jax.random.normal(keys[0], (batch, seq, hidden), dtype=jnp.float32)
    # nn.Linear weight shapes: w1/w3 [inter, hidden], w2 [hidden, inter]
    w1 = jax.random.normal(keys[1], (inter, hidden), dtype=jnp.float32) * 0.05
    w2 = jax.random.normal(keys[2], (hidden, inter), dtype=jnp.float32) * 0.05
    w3 = jax.random.normal(keys[3], (inter, hidden), dtype=jnp.float32) * 0.05

    ref = ref_ffn(x, w1, w2, w3)

    # Exact (input-dtype) path — matches the PyTorch module's f32 math.
    ffn = make_feed_forward(w1, w2, w3)
    out = jax.block_until_ready(ffn(x))
    assert out.shape == (batch, seq, hidden)
    assert jnp.allclose(out, ref, atol=1e-5, rtol=1e-5), "f32 path mismatch"

    # bf16 compute path (recommended for real workloads), looser tolerance.
    ffn_bf16 = make_feed_forward(w1, w2, w3, compute_dtype=jnp.bfloat16)
    out_bf16 = jax.block_until_ready(ffn_bf16(x))
    assert out_bf16.dtype == x.dtype
    assert jnp.allclose(out_bf16, ref, atol=2e-2, rtol=2e-2), "bf16 path mismatch"

    # ---- config 2: multi-tile grid with token AND intermediate padding -----
    hidden2, inter2, tokens2 = 128, 320, 40
    x2 = jax.random.normal(keys[4], (tokens2, hidden2), dtype=jnp.float32)
    w12 = jax.random.normal(keys[5], (inter2, hidden2), dtype=jnp.float32) * 0.03
    w22 = jax.random.normal(keys[6], (hidden2, inter2), dtype=jnp.float32) * 0.03
    w32 = jax.random.normal(keys[7], (inter2, hidden2), dtype=jnp.float32) * 0.03
    ffn2 = make_feed_forward(w12, w22, w32, max_tm=16, max_ti=128)   # force grid (3, 3)
    out2 = jax.block_until_ready(ffn2(x2))
    ref2 = ref_ffn(x2, w12, w22, w32)
    assert jnp.allclose(out2, ref2, atol=1e-4, rtol=1e-3), "multi-tile path mismatch"

    print("KERNEL_OK")
</pallas_src>

<mosaic_0001>
module attributes {stable_mosaic.version = 11 : i64} {
  func.func @_ffn_kernel(%arg0: i32, %arg1: i32, %arg2: memref<16x32xf32, #tpu.memory_space<vmem>>, %arg3: memref<32x256xf32, #tpu.memory_space<vmem>>, %arg4: memref<128x32xf32, #tpu.memory_space<vmem>>, %arg5: memref<16x32xf32, #tpu.memory_space<vmem>>, %arg6: memref<16x32xf32, #tpu.memory_space<vmem>>) attributes {dimension_semantics = [#tpu.dimension_semantics<parallel>, #tpu.dimension_semantics<arbitrary>], iteration_bounds = array<i64: 1, 1>, scalar_prefetch = 0 : i64, scratch_operands = 1 : i64, tpu.core_type = #tpu.core_type<tc>, window_params = [{transform_indices = @transform_0, window_bounds = array<i64: 16, 32>}, {transform_indices = @transform_1, window_bounds = array<i64: 32, 256>}, {transform_indices = @transform_2, window_bounds = array<i64: 128, 32>}, {transform_indices = @transform_3, window_bounds = array<i64: 16, 32>}]} {
    %c0_i32 = arith.constant 0 : i32
    %0 = arith.cmpi eq, %arg1, %c0_i32 : i32
    %1 = arith.extui %0 : i1 to i32
    %c0_i32_0 = arith.constant 0 : i32
    %2 = arith.cmpi ne, %1, %c0_i32_0 : i32
    scf.if %2 {
      %cst_14 = arith.constant 0.000000e+00 : f32
      %23 = vector.broadcast %cst_14 : f32 to vector<16x32xf32>
      %c0_15 = arith.constant 0 : index
      %c0_16 = arith.constant 0 : index
      %24 = vector.load %arg6[%c0_15, %c0_16] : memref<16x32xf32, #tpu.memory_space<vmem>>, vector<16x32xf32>
      tpu.vector_store %arg6[%c0_15, %c0_16], %23 {strides = array<i32>} : memref<16x32xf32, #tpu.memory_space<vmem>>, vector<16x32xf32>,
    } else {
    }
    %c0 = arith.constant 0 : index
    %c0_1 = arith.constant 0 : index
    %3 = vector.load %arg2[%c0, %c0_1] : memref<16x32xf32, #tpu.memory_space<vmem>>, vector<16x32xf32>
    %c0_2 = arith.constant 0 : index
    %c0_3 = arith.constant 0 : index
    %4 = vector.load %arg3[%c0_2, %c0_3] : memref<32x256xf32, #tpu.memory_space<vmem>>, vector<32x256xf32>
    %cst = arith.constant dense<0.000000e+00> : vector<16x256xf32>
    %5 = tpu.matmul %3, %4, %cst {dimension_numbers = #tpu.dot_dimension_numbers<[1], [0], [0], [1], [0, 0, 1, 1], [], []>} : vector<16x32xf32>, vector<32x256xf32>, vector<16x256xf32> -> vector<16x256xf32>
    %6 = vector.extract_strided_slice %5 {offsets = [0, 0], sizes = [16, 128], strides = [1, 1]} : vector<16x256xf32> to vector<16x128xf32>
    %7 = vector.extract_strided_slice %5 {offsets = [0, 128], sizes = [16, 128], strides = [1, 1]} : vector<16x256xf32> to vector<16x128xf32>
    %8 = arith.negf %6 : vector<16x128xf32>
    %9 = math.exp %8 : vector<16x128xf32>
    %cst_4 = arith.constant 1.000000e+00 : f32
    %10 = vector.broadcast %cst_4 : f32 to vector<16x128xf32>
    %11 = arith.addf %10, %9 : vector<16x128xf32>
    %12 = arith.divf %10, %11 : vector<16x128xf32>
    %13 = arith.mulf %6, %12 : vector<16x128xf32>
    %14 = arith.mulf %13, %7 : vector<16x128xf32>
    %c0_5 = arith.constant 0 : index
    %c0_6 = arith.constant 0 : index
    %15 = vector.load %arg6[%c0_5, %c0_6] : memref<16x32xf32, #tpu.memory_space<vmem>>, vector<16x32xf32>
    %c0_7 = arith.constant 0 : index
    %c0_8 = arith.constant 0 : index
    %16 = vector.load %arg4[%c0_7, %c0_8] : memref<128x32xf32, #tpu.memory_space<vmem>>, vector<128x32xf32>
    %cst_9 = arith.constant dense<0.000000e+00> : vector<16x32xf32>
    %17 = tpu.matmul %14, %16, %cst_9 {dimension_numbers = #tpu.dot_dimension_numbers<[1], [0], [0], [1], [0, 0, 1, 1], [], []>} : vector<16x128xf32>, vector<128x32xf32>, vector<16x32xf32> -> vector<16x32xf32>
    %18 = arith.addf %15, %17 : vector<16x32xf32>
    %c0_10 = arith.constant 0 : index
    %c0_11 = arith.constant 0 : index
    %19 = vector.load %arg6[%c0_10, %c0_11] : memref<16x32xf32, #tpu.memory_space<vmem>>, vector<16x32xf32>
    tpu.vector_store %arg6[%c0_10, %c0_11], %18 {strides = array<i32>} : memref<16x32xf32, #tpu.memory_space<vmem>>, vector<16x32xf32>,
    %c0_i32_12 = arith.constant 0 : i32
    %20 = arith.cmpi eq, %arg1, %c0_i32_12 : i32
    %21 = arith.extui %20 : i1 to i32
    %c0_i32_13 = arith.constant 0 : i32
    %22 = arith.cmpi ne, %21, %c0_i32_13 : i32
    scf.if %22 {
      %c0_14 = arith.constant 0 : index
      %c0_15 = arith.constant 0 : index
      %23 = vector.load %arg6[%c0_14, %c0_15] : memref<16x32xf32, #tpu.memory_space<vmem>>, vector<16x32xf32>
      %c0_16 = arith.constant 0 : index
      %c0_17 = arith.constant 0 : index
      %24 = vector.load %arg5[%c0_16, %c0_17] : memref<16x32xf32, #tpu.memory_space<vmem>>, vector<16x32xf32>
      tpu.vector_store %arg5[%c0_16, %c0_17], %23 {strides = array<i32>} : memref<16x32xf32, #tpu.memory_space<vmem>>, vector<16x32xf32>,
    } else {
    }
    return
  }
  func.func @transform_0(%arg0: i32, %arg1: i32) -> (i32, i32) {
    %c0_i32 = arith.constant 0 : i32
    %c0_i32_0 = arith.constant 0 : i32
    return %arg0, %c0_i32 : i32, i32
  }
  func.func @transform_1(%arg0: i32, %arg1: i32) -> (i32, i32) {
    %c0_i32 = arith.constant 0 : i32
    %c0_i32_0 = arith.constant 0 : i32
    return %c0_i32, %arg1 : i32, i32
  }
  func.func @transform_2(%arg0: i32, %arg1: i32) -> (i32, i32) {
    %c0_i32 = arith.constant 0 : i32
    %c0_i32_0 = arith.constant 0 : i32
    return %arg1, %c0_i32 : i32, i32
  }
  func.func @transform_3(%arg0: i32, %arg1: i32) -> (i32, i32) {
    %c0_i32 = arith.constant 0 : i32
    %c0_i32_0 = arith.constant 0 : i32
    return %arg0, %c0_i32 : i32, i32
  }
}

</mosaic_0001>

<llo_original>
// kernel: tpu_custom_call.1
$region0: #{tpu_custom_call.1}
  #allocation0 [shape = 'u32[]', space=smem, size = 0x4, offset = 0x4, fixed_abs, tag = 'smem constant byte address 0x4 - core index']
  #allocation1 [shape = 'u32[144,128]{1,0:T(1,128)}', space=vmem, size = 0x12000, scoped, tag = 'internal scratch']
  #allocation2 [shape = 'f32[16,32]{1,0:T(8,128)}', space=vmem, size = 0x2000, scoped, tag = 'scratch operand']
  %s0 = inlined_call_operand.vmem [shape: f32[16,32], index: 0, kind: input, shape index: {}]
  %s1 = inlined_call_operand.vmem [shape: f32[32,256], index: 1, kind: input, shape index: {}]
  %s2 = inlined_call_operand.vmem [shape: f32[128,32], index: 2, kind: input, shape index: {}]
  %s3 = inlined_call_operand.hbm [shape: f32[16,32], index: 3, kind: output, shape index: {}]
  %s4 = sld [smem:[#allocation0]]
  $region30: #{tpu_custom_call.1} parent=0
    _
  %s6 = ssub.s32 1, %s4
  %s7 = scalar_select 0, %s6, %s4
  $region1: #{tpu_custom_call.1} parent=0
    #allocation3 [shape = 'u8[8192]{0}', space=vmem, size = 0x2000, scoped, tag = 'output window, operand 0, single buffered']
    #allocation4 [shape = 's32[1]{0}', space=sflag, size = 0x4, scoped, tag = 'scoped memory for tpu_custom_call.1']
    %8 = vsyncpa [#allocation4], 0
    // Predicated region
    $region2: #{tpu_custom_call.1} parent=1 // pred_check
      _
    $region3: #{tpu_custom_call.1} parent=1 // pred_check_branch
      %10 = sbr.rel (0) target = $region5
    $region4: #{tpu_custom_call.1} parent=1 // pred_region
      _
    $region5: #{tpu_custom_call.1} parent=1 // pred_fallthru
      _
    // Predicated region
    $region6: #{tpu_custom_call.1} parent=1 // pred_check
      _
    $region7: #{tpu_custom_call.1} parent=1 // pred_check_branch
      %12 = sbr.rel (0) target = $region9
    $region8: #{tpu_custom_call.1} parent=1 // pred_region
      _
    $region9: #{tpu_custom_call.1} parent=1 // pred_fallthru
      _
    // Predicated region
    $region10: #{tpu_custom_call.1} parent=1 // pred_check
      _
    $region11: #{tpu_custom_call.1} parent=1 // pred_check_branch
      %14 = sbr.rel (0) target = $region13
    $region12: #{tpu_custom_call.1} parent=1 // pred_region
      _
    $region13: #{tpu_custom_call.1} parent=1 // pred_fallthru
      _
    %p15 = scmp.eq.s32.totalorder 0, 0
    // Predicated region
    $region14: #{tpu_custom_call.1} parent=1 // pred_check
      %p16 = pneg %p15
    $region15: #{tpu_custom_call.1} parent=1 // pred_check_branch
      %18 = sbr.rel (%p16) target = $region17
    $region16: #{tpu_custom_call.1} parent=1 // pred_region
      %vm19 = vcmask 261120
      %20 = vst.msk [vmem:[#allocation2] sm:$0xff] %vm19, 0.0
      %21 = vst.msk [vmem:[#allocation2 + $0x8] sm:$0xff] %vm19, 0.0
    $region17: #{tpu_custom_call.1} parent=1 // pred_fallthru
      _
    %v22 = vld [vmem:[%s0] sm:$0xff]
    %v23 = vld [vmem:[%s0 + $0x8] sm:$0xff]
    %v24 = vld [vmem:[%s1] sm:$0xff]
    %v25 = vld [vmem:[%s1 + $0x8] sm:$0xff]
    %v26 = vld [vmem:[%s1 + $0x10] sm:$0xff]
    %v27 = vld [vmem:[%s1 + $0x18] sm:$0xff]
    %v28 = vld [vmem:[%s1 + $0x20] sm:$0xff]
    %v29 = vld [vmem:[%s1 + $0x28] sm:$0xff]
    %v30 = vld [vmem:[%s1 + $0x30] sm:$0xff]
    %v31 = vld [vmem:[%s1 + $0x38] sm:$0xff]
    %vm32 = vcmask 261120
    %v34 = vsel %vm32, %v22, 0
    %v37 = vsel %vm32, %v23, 0
    %39 = vmatprep.subr.mxu0 %v25
    %40 = vmatpush1.msra.mxu0 %v24
    %41 = vmatprep.subr.mxu0 %v27
    %42 = vmatpush1.msra.mxu0 %v26
    %43 = vmatprep.subr.mxu0 %v29
    %44 = vmatpush1.msra.mxu0 %v28
    %45 = vmatprep.subr.mxu0 %v31
    %46 = vmatpush1.msra.mxu0 %v30
    %47 = vmatprep.subr.mxu0 0.0
    %48 = vmatpush1.msra.mxu0 0.0
    %49 = vmatprep.subr.mxu0 0.0
    %50 = vmatpush1.msra.mxu0 0.0
    %51 = vmatprep.subr.mxu0 0.0
    %52 = vmatpush1.msra.mxu0 0.0
    %53 = vmatprep.subr.mxu0 0.0
    %54 = vmatpush1.msra.mxu0 0.0
    %55 = vmatprep.subr.mxu0 0.0
    %56 = vmatpush1.msra.mxu0 0.0
    %57 = vmatprep.subr.mxu0 0.0
    %58 = vmatpush1.msra.mxu0 0.0
    %59 = vmatprep.subr.mxu0 0.0
    %60 = vmatpush1.msra.mxu0 0.0
    %61 = vmatprep.subr.mxu0 0.0
    %62 = vmatpush1.msra.mxu0 0.0
    %63 = vmatprep.subr.mxu0 0.0
    %64 = vmatpush1.msra.mxu0 0.0
    %65 = vmatprep.subr.mxu0 0.0
    %66 = vmatpush1.msra.mxu0 0.0
    %67 = vmatprep.subr.mxu0 0.0
    %68 = vmatpush1.msra.mxu0 0.0
    %69 = vmatprep.subr.mxu0 0.0
    %70 = vmatpush1.msra.mxu0 0.0
    %71 = vmatprep.subr.mxu0 0.0
    %72 = vmatpush1.msra.mxu0 0.0
    %73 = vmatprep.subr.mxu0 0.0
    %74 = vmatpush1.msra.mxu0 0.0
    %75 = vmatprep.subr.mxu0 0.0
    %76 = vmatpush1.msra.mxu0 0.0
    %77 = vmatprep.subr.mxu0 0.0
    %78 = vmatpush1.msra.mxu0 0.0
    %79 = vmatprep.subr.mxu0 0.0
    %80 = vmatpush1.msra.mxu0 0.0
    %81 = vmatprep.subr.mxu0 0.0
    %82 = vmatpush1.msra.mxu0 0.0
    %83 = vmatprep.subr.mxu0 0.0
    %84 = vmatpush1.msra.mxu0 0.0
    %85 = vmatprep.subr.mxu0 0.0
    %86 = vmatpush1.msra.mxu0 0.0
    %87 = vmatprep.subr.mxu0 0.0
    %88 = vmatpush1.msra.mxu0 0.0
    %89 = vmatprep.subr.mxu0 0.0
    %90 = vmatpush1.msra.mxu0 0.0
    %91 = vmatprep.subr.mxu0 0.0
    %92 = vmatpush1.msra.mxu0 0.0
    %93 = vmatprep.subr.mxu0 0.0
    %94 = vmatpush1.msra.mxu0 0.0
    %95 = vmatprep.subr.mxu0 0.0
    %96 = vmatpush1.msra.mxu0 0.0
    %97 = vmatprep.subr.mxu0 0.0
    %98 = vmatpush1.msra.mxu0 0.0
    %99 = vmatprep.subr.mxu0 0.0
    %100 = vmatpush1.msra.mxu0 0.0
    %101 = vmatprep.subr.mxu0 0.0
    %102 = vmatpush1.msra.mxu0 0.0
    %103 = vmatprep.mubr.f32.mxu0 0.0
    %104 = vmatmul.mubr.f32.gmra.mrb[0].mxu0 %v34
    %v105 = vpop.f32.mrb[0].mxu0
    %v106 = vadd.f32 0.0, %v105
    %v107 = vpop.f32.mrb[0].mxu0
    %v108 = vadd.f32 0.0, %v107
    %109 = vmatprep.mubr.f32.mxu0 0.0
    %110 = vmatmul.mubr.f32.gmra.mrb[0].mxu0 %v37
    %v111 = vpop.f32.mrb[0].mxu0
    %v112 = vadd.f32 0.0, %v111
    %v113 = vpop.f32.mrb[0].mxu0
    %v114 = vadd.f32 0.0, %v113
    %115 = vdwg.mxu0
    %v116 = vxor.u32 %v106, 2147483648
    %v117 = vxor.u32 %v112, 2147483648
    %v118 = vmul.f32 %v116, 1.442695
    %v119 = vpow.pop %v118
    %v120 = vmul.f32 %v117, 1.442695
    %v121 = vpow.pop %v120
    %v122 = vadd.f32 %v119, 1.0
    %v123 = vadd.f32 %v121, 1.0
    %v124 = vrcp.pop %v122
    %v125 = vmul.f32 1.0, %v124
    %v126 = vrcp.pop %v123
    %v127 = vmul.f32 1.0, %v126
    %v128 = vmul.f32 %v106, %v125
    %v129 = vmul.f32 %v112, %v127
    %v130 = vmul.f32 %v128, %v108
    %v131 = vmul.f32 %v129, %v114
    %v132 = vld [vmem:[#allocation2] sm:$0xff]
    %v133 = vld [vmem:[#allocation2 + $0x8] sm:$0xff]
    %v134 = vld [vmem:[%s2] sm:$0xff]
    %v135 = vld [vmem:[%s2 + $0x8] sm:$0xff]
    %v136 = vld [vmem:[%s2 + $0x10] sm:$0xff]
    %v137 = vld [vmem:[%s2 + $0x18] sm:$0xff]
    %v138 = vld [vmem:[%s2 + $0x20] sm:$0xff]
    %v139 = vld [vmem:[%s2 + $0x28] sm:$0xff]
    %v140 = vld [vmem:[%s2 + $0x30] sm:$0xff]
    %v141 = vld [vmem:[%s2 + $0x38] sm:$0xff]
    %v142 = vld [vmem:[%s2 + $0x40] sm:$0xff]
    %v143 = vld [vmem:[%s2 + $0x48] sm:$0xff]
    %v144 = vld [vmem:[%s2 + $0x50] sm:$0xff]
    %v145 = vld [vmem:[%s2 + $0x58] sm:$0xff]
    %v146 = vld [vmem:[%s2 + $0x60] sm:$0xff]
    %v147 = vld [vmem:[%s2 + $0x68] sm:$0xff]
    %v148 = vld [vmem:[%s2 + $0x70] sm:$0xff]
    %v149 = vld [vmem:[%s2 + $0x78] sm:$0xff]
    %150 = vmatprep.subr.mxu0 0.0
    %151 = vmatpush1.msra.mxu0 %v134
    %152 = vmatprep.subr.mxu0 0.0
    %153 = vmatpush1.msra.mxu0 %v135
    %154 = vmatprep.subr.mxu0 0.0
    %155 = vmatpush1.msra.mxu0 %v136
    %156 = vmatprep.subr.mxu0 0.0
    %157 = vmatpush1.msra.mxu0 %v137
    %158 = vmatprep.subr.mxu0 0.0
    %159 = vmatpush1.msra.mxu0 %v138
    %160 = vmatprep.subr.mxu0 0.0
    %161 = vmatpush1.msra.mxu0 %v139
    %162 = vmatprep.subr.mxu0 0.0
    %163 = vmatpush1.msra.mxu0 %v140
    %164 = vmatprep.subr.mxu0 0.0
    %165 = vmatpush1.msra.mxu0 %v141
    %166 = vmatprep.subr.mxu0 0.0
    %167 = vmatpush1.msra.mxu0 %v142
    %168 = vmatprep.subr.mxu0 0.0
    %169 = vmatpush1.msra.mxu0 %v143
    %170 = vmatprep.subr.mxu0 0.0
    %171 = vmatpush1.msra.mxu0 %v144
    %172 = vmatprep.subr.mxu0 0.0
    %173 = vmatpush1.msra.mxu0 %v145
    %174 = vmatprep.subr.mxu0 0.0
    %175 = vmatpush1.msra.mxu0 %v146
    %176 = vmatprep.subr.mxu0 0.0
    %177 = vmatpush1.msra.mxu0 %v147
    %178 = vmatprep.subr.mxu0 0.0
    %179 = vmatpush1.msra.mxu0 %v148
    %180 = vmatprep.subr.mxu0 0.0
    %181 = vmatpush1.msra.mxu0 %v149
    %182 = vmatprep.subr.mxu0 0.0
    %183 = vmatpush1.msra.mxu0 0.0
    %184 = vmatprep.subr.mxu0 0.0
    %185 = vmatpush1.msra.mxu0 0.0
    %186 = vmatprep.subr.mxu0 0.0
    %187 = vmatpush1.msra.mxu0 0.0
    %188 = vmatprep.subr.mxu0 0.0
    %189 = vmatpush1.msra.mxu0 0.0
    %190 = vmatprep.subr.mxu0 0.0
    %191 = vmatpush1.msra.mxu0 0.0
    %192 = vmatprep.subr.mxu0 0.0
    %193 = vmatpush1.msra.mxu0 0.0
    %194 = vmatprep.subr.mxu0 0.0
    %195 = vmatpush1.msra.mxu0 0.0
    %196 = vmatprep.subr.mxu0 0.0
    %197 = vmatpush1.msra.mxu0 0.0
    %198 = vmatprep.subr.mxu0 0.0
    %199 = vmatpush1.msra.mxu0 0.0
    %200 = vmatprep.subr.mxu0 0.0
    %201 = vmatpush1.msra.mxu0 0.0
    %202 = vmatprep.subr.mxu0 0.0
    %203 = vmatpush1.msra.mxu0 0.0
    %204 = vmatprep.subr.mxu0 0.0
    %205 = vmatpush1.msra.mxu0 0.0
    %206 = vmatprep.subr.mxu0 0.0
    %207 = vmatpush1.msra.mxu0 0.0
    %208 = vmatprep.subr.mxu0 0.0
    %209 = vmatpush1.msra.mxu0 0.0
    %210 = vmatprep.subr.mxu0 0.0
    %211 = vmatpush1.msra.mxu0 0.0
    %212 = vmatprep.subr.mxu0 0.0
    %213 = vmatpush1.msra.mxu0 0.0
    %214 = vmatprep.mubr.f32.mxu0 0.0
    %215 = vmatmul.mubr.f32.gmra.mrb[0].mxu0 %v130
    %v216 = vpop.f32.mrb[0].mxu0
    %v217 = vadd.f32 0.0, %v216
    %v218 = vpop.f32.mrb[0].mxu0
    %219 = vmatprep.mubr.f32.mxu0 0.0
    %220 = vmatmul.mubr.f32.gmra.mrb[0].mxu0 %v131
    %v221 = vpop.f32.mrb[0].mxu0
    %v222 = vadd.f32 0.0, %v221
    %v223 = vpop.f32.mrb[0].mxu0
    %224 = vdwg.mxu0
    %v225 = vadd.f32 %v132, %v217
    %v226 = vadd.f32 %v133, %v222
    %227 = vst.msk [vmem:[#allocation2] sm:$0xff] %vm32, %v225
    %228 = vst.msk [vmem:[#allocation2 + $0x8] sm:$0xff] %vm32, %v226
    // Predicated region
    $region18: #{tpu_custom_call.1} parent=1 // pred_check
      %p229 = pneg %p15
    $region19: #{tpu_custom_call.1} parent=1 // pred_check_branch
      %231 = sbr.rel (%p229) target = $region21
    $region20: #{tpu_custom_call.1} parent=1 // pred_region
      %v232 = vld [vmem:[#allocation2] sm:$0xff]
      %v233 = vld [vmem:[#allocation2 + $0x8] sm:$0xff]
      %234 = vst.msk [vmem:[#allocation3] sm:$0xff] %vm32, %v232
      %235 = vst.msk [vmem:[#allocation3 + $0x8] sm:$0xff] %vm32, %v233
    $region21: #{tpu_custom_call.1} parent=1 // pred_fallthru
      _
    // Predicated region
    $region22: #{tpu_custom_call.1} parent=1 // pred_check
      _
    $region23: #{tpu_custom_call.1} parent=1 // pred_check_branch
      %237 = sbr.rel (0) target = $region25
    $region24: #{tpu_custom_call.1} parent=1 // pred_region
      %s239 = ssub.s32 256, 256
      %240 = vsyncadd [#allocation4], %s239
      %s241 = sshll.u32 [#allocation3], 4
      %s242 = int_to_ptr.vmem [resolvable:$true] %s241
      %247 = dma.vmem_to_hbm [thread:$0]  %s242, 256, %s3, [#allocation4], 128, 128, 8
    $region25: #{tpu_custom_call.1} parent=1 // pred_fallthru
      _
    // Predicated region
    $region26: #{tpu_custom_call.1} parent=1 // pred_check
      _
    $region27: #{tpu_custom_call.1} parent=1 // pred_check_branch
      %249 = sbr.rel (0) target = $region29
    $region28: #{tpu_custom_call.1} parent=1 // pred_region
      %250 = dma.done [#allocation4], 256
    $region29: #{tpu_custom_call.1} parent=1 // pred_fallthru
      _
    %251 = vsyncpa [#allocation4], 1

</llo_original>
